<compile_context>
chip_gen: v6e
topology: v6e:2x2x1
jax: 0.10.0
libtpu: 0.0.40
codegen_flags: <defaults>
</compile_context>

<pallas_src>
import functools

import jax
import jax.numpy as jnp
from jax.experimental import pallas as pl
from jax.experimental.pallas import tpu as pltpu

BN_EPS = 1e-5
LANE = 128           # lane width: pad feature dim to a multiple of this
BF16_SUBLANE = 16    # bf16 sublane pack: pad batch dim to a multiple of this


def _round_up(n, m):
    return ((n + m - 1) // m) * m


def residual_phi_kernel(nblocks, batch, x_ref, w1_ref, gamma_ref, beta_ref,
                        w2_ref, b2_ref, xout_ref, rs_ref):
    """Run all `nblocks` ResBlocks in one invocation (static unroll).

    Shapes (Bp = batch padded to 16, Dp = dim padded to 128):
      x_ref      [Bp, Dp]            f32  (rows >= batch are zero padding)
      w1/w2      [nblocks, Dp, Dp]   bf16 (pre-transposed: kernel computes x @ W)
      gamma/beta [nblocks, 1, Dp]    f32
      b2         [nblocks, 1, Dp]    f32
      xout_ref   [Bp, Dp]            f32
      rs_ref     [nblocks, Bp, Dp]   f32
    Note: b1 is intentionally absent — it cancels exactly inside training-mode BN.
    """
    x = x_ref[...]  # [Bp, Dp] f32 running activation

    for i in range(nblocks):  # static unroll — nblocks is a small Python constant
        # --- Linear 1 (MXU, bf16 operands, f32 accumulation). No b1: dead under BN. ---
        h = jnp.dot(x.astype(jnp.bfloat16), w1_ref[i],
                    preferred_element_type=jnp.float32)            # [Bp, Dp]

        # --- BatchNorm1d (training): statistics over the REAL batch rows only. ---
        hr = h[:batch]                                              # static slice
        mean = jnp.mean(hr, axis=0, keepdims=True)                  # [1, Dp]
        mean_sq = jnp.mean(hr * hr, axis=0, keepdims=True)          # [1, Dp]
        var = jnp.maximum(mean_sq - mean * mean, 0.0)               # clamp cancellation
        scale = jax.lax.rsqrt(var + BN_EPS) * gamma_ref[i]          # EUP rsqrt
        shift = beta_ref[i] - mean * scale                          # folded affine

        # --- BN apply + ReLU in one pass over the tile (VPU) ---
        a = jnp.maximum(h * scale + shift, 0.0)

        # --- Linear 2 (MXU) ---
        r = jnp.dot(a.astype(jnp.bfloat16), w2_ref[i],
                    preferred_element_type=jnp.float32) + b2_ref[i]

        # --- Residual add + record r (lane-dense [Bp, Dp] store) ---
        x = x + r
        rs_ref[i] = r.astype(rs_ref.dtype)

    xout_ref[...] = x.astype(xout_ref.dtype)  # written once, at the end


def prepare_params(w1, b1, gamma, beta, w2, b2):
    """One-time parameter preparation (hoisted out of the per-call forward path):
    zero-pad the feature dim to the 128-lane width, cast matmul weights to bf16.
    b1 is dropped (cancels exactly inside training-mode BatchNorm)."""
    del b1
    nblocks, dim, _ = w1.shape
    dp = _round_up(dim, LANE)
    pad_w = ((0, 0), (0, dp - dim), (0, dp - dim))
    pad_v = ((0, 0), (0, 0), (0, dp - dim))
    w1p = jnp.pad(w1.astype(jnp.float32), pad_w).astype(jnp.bfloat16)
    w2p = jnp.pad(w2.astype(jnp.float32), pad_w).astype(jnp.bfloat16)
    gamma_p = jnp.pad(gamma.astype(jnp.float32), pad_v)
    beta_p = jnp.pad(beta.astype(jnp.float32), pad_v)
    b2p = jnp.pad(b2.astype(jnp.float32), pad_v)
    return (w1p, gamma_p, beta_p, w2p, b2p)


@functools.partial(jax.jit, static_argnames=("dim",))
def residual_phi_forward(x, params, *, dim):
    """x: [B, dim]; params: output of prepare_params (padded/bf16-cast once).

    Returns (x_out [B, dim], rs [nblocks, B, dim]) matching ResidualPhi.forward
    (rs[i] is the residual produced by block i)."""
    w1p, gamma_p, beta_p, w2p, b2p = params
    nblocks, dp, _ = w1p.shape
    batch = x.shape[0]
    bpad = _round_up(batch, BF16_SUBLANE)

    # Only the activation is padded per call; padded rows/cols are exactly zero.
    xp = jnp.pad(x.astype(jnp.float32), ((0, bpad - batch), (0, dp - dim)))

    kernel = functools.partial(residual_phi_kernel, nblocks, batch)

    x_out_p, rs_p = pl.pallas_call(
        kernel,
        out_shape=(
            jax.ShapeDtypeStruct((bpad, dp), jnp.float32),
            jax.ShapeDtypeStruct((nblocks, bpad, dp), jnp.float32),
        ),
        in_specs=[pl.BlockSpec(memory_space=pltpu.MemorySpace.VMEM)] * 6,
        out_specs=(
            pl.BlockSpec(memory_space=pltpu.MemorySpace.VMEM),
            pl.BlockSpec(memory_space=pltpu.MemorySpace.VMEM),
        ),
        # VMEM guard: fits comfortably on every generation at these shapes; for much
        # larger dim/nblocks switch to a grid over nblocks with per-block weight tiles.
        compiler_params=pltpu.CompilerParams(vmem_limit_bytes=32 * 1024 * 1024),
    )(xp, w1p, gamma_p, beta_p, w2p, b2p)

    # Strip batch + feature padding.
    return (x_out_p[:batch, :dim].astype(x.dtype),
            rs_p[:, :batch, :dim].astype(x.dtype))


def residual_phi_reference(x, w1, b1, gamma, beta, w2, b2,
                           matmul_dtype=jnp.float32):
    """Pure-JAX reference matching the PyTorch module (b1 included, two-pass var).
    `matmul_dtype=bf16` mirrors the kernel's mixed-precision MXU feeding."""
    nblocks = w1.shape[0]
    x = x.astype(jnp.float32)
    rs = []
    for i in range(nblocks):
        h = jnp.dot(x.astype(matmul_dtype), w1[i].astype(matmul_dtype),
                    preferred_element_type=jnp.float32) + b1[i]
        mean = jnp.mean(h, axis=0, keepdims=True)
        var = jnp.mean((h - mean) ** 2, axis=0, keepdims=True)
        h = (h - mean) * jax.lax.rsqrt(var + BN_EPS) * gamma[i] + beta[i]
        a = jnp.maximum(h, 0.0)
        r = jnp.dot(a.astype(matmul_dtype), w2[i].astype(matmul_dtype),
                    preferred_element_type=jnp.float32) + b2[i]
        x = x + r
        rs.append(r)
    return x, jnp.stack(rs, axis=0)


if __name__ == "__main__":
    # Small shapes consistent with the module: ResidualPhi(nblocks=3, dim=32), batch of 8.
    nblocks, dim, batch = 3, 32, 8

    key = jax.random.PRNGKey(0)
    k_x, k_w1, k_b1, k_w2, k_b2 = jax.random.split(key, 5)

    x = jax.random.normal(k_x, (batch, dim), dtype=jnp.float32)

    # Deterministic synthetic parameters (Linear weights stored pre-transposed as
    # [in, out], scaled small; BN gamma=1, beta=0 — fresh-module defaults).
    w1 = 0.1 * jax.random.normal(k_w1, (nblocks, dim, dim), dtype=jnp.float32)
    b1 = 0.1 * jax.random.normal(k_b1, (nblocks, 1, dim), dtype=jnp.float32)
    w2 = 0.1 * jax.random.normal(k_w2, (nblocks, dim, dim), dtype=jnp.float32)
    b2 = 0.1 * jax.random.normal(k_b2, (nblocks, 1, dim), dtype=jnp.float32)
    gamma = jnp.ones((nblocks, 1, dim), dtype=jnp.float32)
    beta = jnp.zeros((nblocks, 1, dim), dtype=jnp.float32)

    # One-time prep (padding + bf16 cast hoisted off the steady-state forward path).
    params = prepare_params(w1, b1, gamma, beta, w2, b2)

    x_out, rs = residual_phi_forward(x, params, dim=dim)
    jax.block_until_ready(x_out)
    jax.block_until_ready(rs)

    # Precision-matched reference (bf16 matmul operands, f32 accumulation, b1 kept:
    # its exact cancellation inside BN is part of what we verify) — tight check.
    x_bf, rs_bf = residual_phi_reference(x, w1, b1, gamma, beta, w2, b2,
                                         matmul_dtype=jnp.bfloat16)
    assert jnp.allclose(x_out, x_bf, atol=2e-3, rtol=2e-3), "x mismatch (bf16-matched ref)"
    assert jnp.allclose(rs, rs_bf, atol=2e-3, rtol=2e-3), "rs mismatch (bf16-matched ref)"

    # Full-f32 PyTorch-semantics reference — loose tolerance accounts for bf16 MXU drift.
    x_f32, rs_f32 = residual_phi_reference(x, w1, b1, gamma, beta, w2, b2)
    assert jnp.allclose(x_out, x_f32, atol=1e-1, rtol=1e-1), "x mismatch (f32 ref)"
    assert jnp.allclose(rs, rs_f32, atol=1e-1, rtol=1e-1), "rs mismatch (f32 ref)"

    print("KERNEL_OK")
</pallas_src>

<mosaic_0001>
module attributes {stable_mosaic.version = 11 : i64} {
  func.func @residual_phi_kernel(%arg0: memref<16x128xf32, #tpu.memory_space<vmem>>, %arg1: memref<3x128x128xbf16, #tpu.memory_space<vmem>>, %arg2: memref<3x1x128xf32, #tpu.memory_space<vmem>>, %arg3: memref<3x1x128xf32, #tpu.memory_space<vmem>>, %arg4: memref<3x128x128xbf16, #tpu.memory_space<vmem>>, %arg5: memref<3x1x128xf32, #tpu.memory_space<vmem>>, %arg6: memref<16x128xf32, #tpu.memory_space<vmem>>, %arg7: memref<3x16x128xf32, #tpu.memory_space<vmem>>) attributes {dimension_semantics = [], scalar_prefetch = 0 : i64, scratch_operands = 0 : i64, tpu.core_type = #tpu.core_type<tc>} {
    %c0 = arith.constant 0 : index
    %c0_0 = arith.constant 0 : index
    %0 = vector.load %arg0[%c0, %c0_0] : memref<16x128xf32, #tpu.memory_space<vmem>>, vector<16x128xf32>
    %1 = arith.truncf %0 : vector<16x128xf32> to vector<16x128xbf16>
    %c0_1 = arith.constant 0 : index
    %c0_2 = arith.constant 0 : index
    %c0_3 = arith.constant 0 : index
    %2 = vector.load %arg1[%c0_1, %c0_2, %c0_3] : memref<3x128x128xbf16, #tpu.memory_space<vmem>>, vector<1x128x128xbf16>
    %3 = vector.shape_cast %2 : vector<1x128x128xbf16> to vector<128x128xbf16>
    %cst = arith.constant dense<0.000000e+00> : vector<16x128xf32>
    %4 = tpu.matmul %1, %3, %cst {dimension_numbers = #tpu.dot_dimension_numbers<[1], [0], [0], [1], [0, 0, 1, 1], [], []>} : vector<16x128xbf16>, vector<128x128xbf16>, vector<16x128xf32> -> vector<16x128xf32>
    %5 = vector.extract_strided_slice %4 {offsets = [0, 0], sizes = [8, 128], strides = [1, 1]} : vector<16x128xf32> to vector<8x128xf32>
    %cst_4 = arith.constant dense<0.000000e+00> : vector<128xf32>
    %6 = vector.multi_reduction <add>, %5, %cst_4 [0] : vector<8x128xf32> to vector<128xf32>
    %7 = vector.shape_cast %6 : vector<128xf32> to vector<1x128xf32>
    %cst_5 = arith.constant 8.000000e+00 : f32
    %8 = vector.broadcast %cst_5 : f32 to vector<1x128xf32>
    %9 = arith.divf %7, %8 : vector<1x128xf32>
    %10 = arith.mulf %5, %5 : vector<8x128xf32>
    %cst_6 = arith.constant dense<0.000000e+00> : vector<128xf32>
    %11 = vector.multi_reduction <add>, %10, %cst_6 [0] : vector<8x128xf32> to vector<128xf32>
    %12 = vector.shape_cast %11 : vector<128xf32> to vector<1x128xf32>
    %cst_7 = arith.constant 8.000000e+00 : f32
    %13 = vector.broadcast %cst_7 : f32 to vector<1x128xf32>
    %14 = arith.divf %12, %13 : vector<1x128xf32>
    %15 = arith.mulf %9, %9 : vector<1x128xf32>
    %16 = arith.subf %14, %15 : vector<1x128xf32>
    %cst_8 = arith.constant 0.000000e+00 : f32
    %17 = vector.broadcast %cst_8 : f32 to vector<1x128xf32>
    %18 = arith.maximumf %16, %17 : vector<1x128xf32>
    %cst_9 = arith.constant 9.99999974E-6 : f32
    %19 = vector.broadcast %cst_9 : f32 to vector<1x128xf32>
    %20 = arith.addf %18, %19 : vector<1x128xf32>
    %21 = math.rsqrt %20 : vector<1x128xf32>
    %c0_10 = arith.constant 0 : index
    %c0_11 = arith.constant 0 : index
    %c0_12 = arith.constant 0 : index
    %22 = vector.load %arg2[%c0_10, %c0_11, %c0_12] : memref<3x1x128xf32, #tpu.memory_space<vmem>>, vector<1x1x128xf32>
    %23 = vector.shape_cast %22 : vector<1x1x128xf32> to vector<1x128xf32>
    %24 = arith.mulf %21, %23 : vector<1x128xf32>
    %c0_13 = arith.constant 0 : index
    %c0_14 = arith.constant 0 : index
    %c0_15 = arith.constant 0 : index
    %25 = vector.load %arg3[%c0_13, %c0_14, %c0_15] : memref<3x1x128xf32, #tpu.memory_space<vmem>>, vector<1x1x128xf32>
    %26 = vector.shape_cast %25 : vector<1x1x128xf32> to vector<1x128xf32>
    %27 = arith.mulf %9, %24 : vector<1x128xf32>
    %28 = arith.subf %26, %27 : vector<1x128xf32>
    %29 = vector.broadcast %24 : vector<1x128xf32> to vector<16x128xf32>
    %30 = arith.mulf %4, %29 : vector<16x128xf32>
    %31 = vector.broadcast %28 : vector<1x128xf32> to vector<16x128xf32>
    %32 = arith.addf %30, %31 : vector<16x128xf32>
    %cst_16 = arith.constant 0.000000e+00 : f32
    %33 = vector.broadcast %cst_16 : f32 to vector<16x128xf32>
    %34 = arith.maximumf %32, %33 : vector<16x128xf32>
    %35 = arith.truncf %34 : vector<16x128xf32> to vector<16x128xbf16>
    %c0_17 = arith.constant 0 : index
    %c0_18 = arith.constant 0 : index
    %c0_19 = arith.constant 0 : index
    %36 = vector.load %arg4[%c0_17, %c0_18, %c0_19] : memref<3x128x128xbf16, #tpu.memory_space<vmem>>, vector<1x128x128xbf16>
    %37 = vector.shape_cast %36 : vector<1x128x128xbf16> to vector<128x128xbf16>
    %cst_20 = arith.constant dense<0.000000e+00> : vector<16x128xf32>
    %38 = tpu.matmul %35, %37, %cst_20 {dimension_numbers = #tpu.dot_dimension_numbers<[1], [0], [0], [1], [0, 0, 1, 1], [], []>} : vector<16x128xbf16>, vector<128x128xbf16>, vector<16x128xf32> -> vector<16x128xf32>
    %c0_21 = arith.constant 0 : index
    %c0_22 = arith.constant 0 : index
    %c0_23 = arith.constant 0 : index
    %39 = vector.load %arg5[%c0_21, %c0_22, %c0_23] : memref<3x1x128xf32, #tpu.memory_space<vmem>>, vector<1x1x128xf32>
    %40 = vector.shape_cast %39 : vector<1x1x128xf32> to vector<1x128xf32>
    %41 = vector.broadcast %40 : vector<1x128xf32> to vector<16x128xf32>
    %42 = arith.addf %38, %41 : vector<16x128xf32>
    %43 = arith.addf %0, %42 : vector<16x128xf32>
    %c0_24 = arith.constant 0 : index
    %c0_25 = arith.constant 0 : index
    %c0_26 = arith.constant 0 : index
    %44 = vector.load %arg7[%c0_24, %c0_25, %c0_26] : memref<3x16x128xf32, #tpu.memory_space<vmem>>, vector<1x16x128xf32>
    %45 = vector.shape_cast %44 : vector<1x16x128xf32> to vector<16x128xf32>
    %46 = vector.shape_cast %42 : vector<16x128xf32> to vector<1x16x128xf32>
    tpu.vector_store %arg7[%c0_24, %c0_25, %c0_26], %46 {strides = array<i32>} : memref<3x16x128xf32, #tpu.memory_space<vmem>>, vector<1x16x128xf32>,
    %47 = arith.truncf %43 : vector<16x128xf32> to vector<16x128xbf16>
    %c1 = arith.constant 1 : index
    %c0_27 = arith.constant 0 : index
    %c0_28 = arith.constant 0 : index
    %48 = vector.load %arg1[%c1, %c0_27, %c0_28] : memref<3x128x128xbf16, #tpu.memory_space<vmem>>, vector<1x128x128xbf16>
    %49 = vector.shape_cast %48 : vector<1x128x128xbf16> to vector<128x128xbf16>
    %cst_29 = arith.constant dense<0.000000e+00> : vector<16x128xf32>
    %50 = tpu.matmul %47, %49, %cst_29 {dimension_numbers = #tpu.dot_dimension_numbers<[1], [0], [0], [1], [0, 0, 1, 1], [], []>} : vector<16x128xbf16>, vector<128x128xbf16>, vector<16x128xf32> -> vector<16x128xf32>
    %51 = vector.extract_strided_slice %50 {offsets = [0, 0], sizes = [8, 128], strides = [1, 1]} : vector<16x128xf32> to vector<8x128xf32>
    %cst_30 = arith.constant dense<0.000000e+00> : vector<128xf32>
    %52 = vector.multi_reduction <add>, %51, %cst_30 [0] : vector<8x128xf32> to vector<128xf32>
    %53 = vector.shape_cast %52 : vector<128xf32> to vector<1x128xf32>
    %cst_31 = arith.constant 8.000000e+00 : f32
    %54 = vector.broadcast %cst_31 : f32 to vector<1x128xf32>
    %55 = arith.divf %53, %54 : vector<1x128xf32>
    %56 = arith.mulf %51, %51 : vector<8x128xf32>
    %cst_32 = arith.constant dense<0.000000e+00> : vector<128xf32>
    %57 = vector.multi_reduction <add>, %56, %cst_32 [0] : vector<8x128xf32> to vector<128xf32>
    %58 = vector.shape_cast %57 : vector<128xf32> to vector<1x128xf32>
    %cst_33 = arith.constant 8.000000e+00 : f32
    %59 = vector.broadcast %cst_33 : f32 to vector<1x128xf32>
    %60 = arith.divf %58, %59 : vector<1x128xf32>
    %61 = arith.mulf %55, %55 : vector<1x128xf32>
    %62 = arith.subf %60, %61 : vector<1x128xf32>
    %cst_34 = arith.constant 0.000000e+00 : f32
    %63 = vector.broadcast %cst_34 : f32 to vector<1x128xf32>
    %64 = arith.maximumf %62, %63 : vector<1x128xf32>
    %cst_35 = arith.constant 9.99999974E-6 : f32
    %65 = vector.broadcast %cst_35 : f32 to vector<1x128xf32>
    %66 = arith.addf %64, %65 : vector<1x128xf32>
    %67 = math.rsqrt %66 : vector<1x128xf32>
    %c1_36 = arith.constant 1 : index
    %c0_37 = arith.constant 0 : index
    %c0_38 = arith.constant 0 : index
    %68 = vector.load %arg2[%c1_36, %c0_37, %c0_38] : memref<3x1x128xf32, #tpu.memory_space<vmem>>, vector<1x1x128xf32>
    %69 = vector.shape_cast %68 : vector<1x1x128xf32> to vector<1x128xf32>
    %70 = arith.mulf %67, %69 : vector<1x128xf32>
    %c1_39 = arith.constant 1 : index
    %c0_40 = arith.constant 0 : index
    %c0_41 = arith.constant 0 : index
    %71 = vector.load %arg3[%c1_39, %c0_40, %c0_41] : memref<3x1x128xf32, #tpu.memory_space<vmem>>, vector<1x1x128xf32>
    %72 = vector.shape_cast %71 : vector<1x1x128xf32> to vector<1x128xf32>
    %73 = arith.mulf %55, %70 : vector<1x128xf32>
    %74 = arith.subf %72, %73 : vector<1x128xf32>
    %75 = vector.broadcast %70 : vector<1x128xf32> to vector<16x128xf32>
    %76 = arith.mulf %50, %75 : vector<16x128xf32>
    %77 = vector.broadcast %74 : vector<1x128xf32> to vector<16x128xf32>
    %78 = arith.addf %76, %77 : vector<16x128xf32>
    %cst_42 = arith.constant 0.000000e+00 : f32
    %79 = vector.broadcast %cst_42 : f32 to vector<16x128xf32>
    %80 = arith.maximumf %78, %79 : vector<16x128xf32>
    %81 = arith.truncf %80 : vector<16x128xf32> to vector<16x128xbf16>
    %c1_43 = arith.constant 1 : index
    %c0_44 = arith.constant 0 : index
    %c0_45 = arith.constant 0 : index
    %82 = vector.load %arg4[%c1_43, %c0_44, %c0_45] : memref<3x128x128xbf16, #tpu.memory_space<vmem>>, vector<1x128x128xbf16>
    %83 = vector.shape_cast %82 : vector<1x128x128xbf16> to vector<128x128xbf16>
    %cst_46 = arith.constant dense<0.000000e+00> : vector<16x128xf32>
    %84 = tpu.matmul %81, %83, %cst_46 {dimension_numbers = #tpu.dot_dimension_numbers<[1], [0], [0], [1], [0, 0, 1, 1], [], []>} : vector<16x128xbf16>, vector<128x128xbf16>, vector<16x128xf32> -> vector<16x128xf32>
    %c1_47 = arith.constant 1 : index
    %c0_48 = arith.constant 0 : index
    %c0_49 = arith.constant 0 : index
    %85 = vector.load %arg5[%c1_47, %c0_48, %c0_49] : memref<3x1x128xf32, #tpu.memory_space<vmem>>, vector<1x1x128xf32>
    %86 = vector.shape_cast %85 : vector<1x1x128xf32> to vector<1x128xf32>
    %87 = vector.broadcast %86 : vector<1x128xf32> to vector<16x128xf32>
    %88 = arith.addf %84, %87 : vector<16x128xf32>
    %89 = arith.addf %43, %88 : vector<16x128xf32>
    %c1_50 = arith.constant 1 : index
    %c0_51 = arith.constant 0 : index
    %c0_52 = arith.constant 0 : index
    %90 = vector.load %arg7[%c1_50, %c0_51, %c0_52] : memref<3x16x128xf32, #tpu.memory_space<vmem>>, vector<1x16x128xf32>
    %91 = vector.shape_cast %90 : vector<1x16x128xf32> to vector<16x128xf32>
    %92 = vector.shape_cast %88 : vector<16x128xf32> to vector<1x16x128xf32>
    tpu.vector_store %arg7[%c1_50, %c0_51, %c0_52], %92 {strides = array<i32>} : memref<3x16x128xf32, #tpu.memory_space<vmem>>, vector<1x16x128xf32>,
    %93 = arith.truncf %89 : vector<16x128xf32> to vector<16x128xbf16>
    %c2 = arith.constant 2 : index
    %c0_53 = arith.constant 0 : index
    %c0_54 = arith.constant 0 : index
    %94 = vector.load %arg1[%c2, %c0_53, %c0_54] : memref<3x128x128xbf16, #tpu.memory_space<vmem>>, vector<1x128x128xbf16>
    %95 = vector.shape_cast %94 : vector<1x128x128xbf16> to vector<128x128xbf16>
    %cst_55 = arith.constant dense<0.000000e+00> : vector<16x128xf32>
    %96 = tpu.matmul %93, %95, %cst_55 {dimension_numbers = #tpu.dot_dimension_numbers<[1], [0], [0], [1], [0, 0, 1, 1], [], []>} : vector<16x128xbf16>, vector<128x128xbf16>, vector<16x128xf32> -> vector<16x128xf32>
    %97 = vector.extract_strided_slice %96 {offsets = [0, 0], sizes = [8, 128], strides = [1, 1]} : vector<16x128xf32> to vector<8x128xf32>
    %cst_56 = arith.constant dense<0.000000e+00> : vector<128xf32>
    %98 = vector.multi_reduction <add>, %97, %cst_56 [0] : vector<8x128xf32> to vector<128xf32>
    %99 = vector.shape_cast %98 : vector<128xf32> to vector<1x128xf32>
    %cst_57 = arith.constant 8.000000e+00 : f32
    %100 = vector.broadcast %cst_57 : f32 to vector<1x128xf32>
    %101 = arith.divf %99, %100 : vector<1x128xf32>
    %102 = arith.mulf %97, %97 : vector<8x128xf32>
    %cst_58 = arith.constant dense<0.000000e+00> : vector<128xf32>
    %103 = vector.multi_reduction <add>, %102, %cst_58 [0] : vector<8x128xf32> to vector<128xf32>
    %104 = vector.shape_cast %103 : vector<128xf32> to vector<1x128xf32>
    %cst_59 = arith.constant 8.000000e+00 : f32
    %105 = vector.broadcast %cst_59 : f32 to vector<1x128xf32>
    %106 = arith.divf %104, %105 : vector<1x128xf32>
    %107 = arith.mulf %101, %101 : vector<1x128xf32>
    %108 = arith.subf %106, %107 : vector<1x128xf32>
    %cst_60 = arith.constant 0.000000e+00 : f32
    %109 = vector.broadcast %cst_60 : f32 to vector<1x128xf32>
    %110 = arith.maximumf %108, %109 : vector<1x128xf32>
    %cst_61 = arith.constant 9.99999974E-6 : f32
    %111 = vector.broadcast %cst_61 : f32 to vector<1x128xf32>
    %112 = arith.addf %110, %111 : vector<1x128xf32>
    %113 = math.rsqrt %112 : vector<1x128xf32>
    %c2_62 = arith.constant 2 : index
    %c0_63 = arith.constant 0 : index
    %c0_64 = arith.constant 0 : index
    %114 = vector.load %arg2[%c2_62, %c0_63, %c0_64] : memref<3x1x128xf32, #tpu.memory_space<vmem>>, vector<1x1x128xf32>
    %115 = vector.shape_cast %114 : vector<1x1x128xf32> to vector<1x128xf32>
    %116 = arith.mulf %113, %115 : vector<1x128xf32>
    %c2_65 = arith.constant 2 : index
    %c0_66 = arith.constant 0 : index
    %c0_67 = arith.constant 0 : index
    %117 = vector.load %arg3[%c2_65, %c0_66, %c0_67] : memref<3x1x128xf32, #tpu.memory_space<vmem>>, vector<1x1x128xf32>
    %118 = vector.shape_cast %117 : vector<1x1x128xf32> to vector<1x128xf32>
    %119 = arith.mulf %101, %116 : vector<1x128xf32>
    %120 = arith.subf %118, %119 : vector<1x128xf32>
    %121 = vector.broadcast %116 : vector<1x128xf32> to vector<16x128xf32>
    %122 = arith.mulf %96, %121 : vector<16x128xf32>
    %123 = vector.broadcast %120 : vector<1x128xf32> to vector<16x128xf32>
    %124 = arith.addf %122, %123 : vector<16x128xf32>
    %cst_68 = arith.constant 0.000000e+00 : f32
    %125 = vector.broadcast %cst_68 : f32 to vector<16x128xf32>
    %126 = arith.maximumf %124, %125 : vector<16x128xf32>
    %127 = arith.truncf %126 : vector<16x128xf32> to vector<16x128xbf16>
    %c2_69 = arith.constant 2 : index
    %c0_70 = arith.constant 0 : index
    %c0_71 = arith.constant 0 : index
    %128 = vector.load %arg4[%c2_69, %c0_70, %c0_71] : memref<3x128x128xbf16, #tpu.memory_space<vmem>>, vector<1x128x128xbf16>
    %129 = vector.shape_cast %128 : vector<1x128x128xbf16> to vector<128x128xbf16>
    %cst_72 = arith.constant dense<0.000000e+00> : vector<16x128xf32>
    %130 = tpu.matmul %127, %129, %cst_72 {dimension_numbers = #tpu.dot_dimension_numbers<[1], [0], [0], [1], [0, 0, 1, 1], [], []>} : vector<16x128xbf16>, vector<128x128xbf16>, vector<16x128xf32> -> vector<16x128xf32>
    %c2_73 = arith.constant 2 : index
    %c0_74 = arith.constant 0 : index
    %c0_75 = arith.constant 0 : index
    %131 = vector.load %arg5[%c2_73, %c0_74, %c0_75] : memref<3x1x128xf32, #tpu.memory_space<vmem>>, vector<1x1x128xf32>
    %132 = vector.shape_cast %131 : vector<1x1x128xf32> to vector<1x128xf32>
    %133 = vector.broadcast %132 : vector<1x128xf32> to vector<16x128xf32>
    %134 = arith.addf %130, %133 : vector<16x128xf32>
    %135 = arith.addf %89, %134 : vector<16x128xf32>
    %c2_76 = arith.constant 2 : index
    %c0_77 = arith.constant 0 : index
    %c0_78 = arith.constant 0 : index
    %136 = vector.load %arg7[%c2_76, %c0_77, %c0_78] : memref<3x16x128xf32, #tpu.memory_space<vmem>>, vector<1x16x128xf32>
    %137 = vector.shape_cast %136 : vector<1x16x128xf32> to vector<16x128xf32>
    %138 = vector.shape_cast %134 : vector<16x128xf32> to vector<1x16x128xf32>
    tpu.vector_store %arg7[%c2_76, %c0_77, %c0_78], %138 {strides = array<i32>} : memref<3x16x128xf32, #tpu.memory_space<vmem>>, vector<1x16x128xf32>,
    %c0_79 = arith.constant 0 : index
    %c0_80 = arith.constant 0 : index
    %139 = vector.load %arg6[%c0_79, %c0_80] : memref<16x128xf32, #tpu.memory_space<vmem>>, vector<16x128xf32>
    tpu.vector_store %arg6[%c0_79, %c0_80], %135 {strides = array<i32>} : memref<16x128xf32, #tpu.memory_space<vmem>>, vector<16x128xf32>,
    return
  }
}

</mosaic_0001>

<llo_original>
// kernel: residual_phi_forward.1
$region0: #{residual_phi_forward.1}
  #allocation0 [shape = 'u32[]', space=smem, size = 0x4, offset = 0x4, fixed_abs, tag = 'smem constant byte address 0x4 - core index']
  #allocation1 [shape = 'u32[144,128]{1,0:T(1,128)}', space=vmem, size = 0x12000, scoped, tag = 'internal scratch']
  %s0 = inlined_call_operand.vmem [shape: f32[16,128], index: 0, kind: input, shape index: {}]
  %s1 = inlined_call_operand.hbm [shape: bf16[3,128,128], index: 1, kind: input, shape index: {}]
  %s2 = inlined_call_operand.vmem [shape: f32[3,1,128], index: 2, kind: input, shape index: {}]
  %s3 = inlined_call_operand.vmem [shape: f32[3,1,128], index: 3, kind: input, shape index: {}]
  %s4 = inlined_call_operand.hbm [shape: bf16[3,128,128], index: 4, kind: input, shape index: {}]
  %s5 = inlined_call_operand.vmem [shape: f32[3,1,128], index: 5, kind: input, shape index: {}]
  %s6 = inlined_call_operand.vmem [shape: f32[16,128], index: 6, kind: output, shape index: {0}]
  %s7 = inlined_call_operand.vmem [shape: f32[3,16,128], index: 7, kind: output, shape index: {1}]
  %8 = xla_tuple %s6, %s7
  %s9 = sld [smem:[#allocation0]]
  $region50: #{residual_phi_forward.1} parent=0
    _
  %s11 = ssub.s32 1, %s9
  %s12 = scalar_select 0, %s11, %s9
  $region1: #{residual_phi_forward.1} parent=0
    #allocation2 [shape = 'u8[98304]{0}', space=vmem, size = 0x18000, scoped, tag = 'input window, operand 1, single buffered']
    #allocation3 [shape = 's32[1]{0}', space=sflag, size = 0x4, scoped, tag = 'scoped memory for residual_phi_forward.1']
    #allocation4 [shape = 'u8[98304]{0}', space=vmem, size = 0x18000, scoped, tag = 'input window, operand 4, single buffered']
    #allocation5 [shape = 's32[1]{0}', space=sflag, size = 0x4, scoped, tag = 'scoped memory for residual_phi_forward.1']
    %13 = vsyncpa [#allocation3], 0
    %14 = vsyncpa [#allocation5], 0
    // Predicated region
    $region2: #{residual_phi_forward.1} parent=1 // pred_check
      _
    $region3: #{residual_phi_forward.1} parent=1 // pred_check_branch
      %16 = sbr.rel (0) target = $region5
    $region4: #{residual_phi_forward.1} parent=1 // pred_region
      _
    $region5: #{residual_phi_forward.1} parent=1 // pred_fallthru
      _
    // Predicated region
    $region6: #{residual_phi_forward.1} parent=1 // pred_check
      _
    $region7: #{residual_phi_forward.1} parent=1 // pred_check_branch
      %18 = sbr.rel (0) target = $region9
    $region8: #{residual_phi_forward.1} parent=1 // pred_region
      %s20 = ssub.s32 3072, 3072
      %21 = vsyncadd [#allocation3], %s20
      %s22 = sshll.u32 [#allocation2], 4
      %s23 = int_to_ptr.vmem [resolvable:$true] %s22
      %28 = dma.hbm_to_vmem [thread:$0]  %s1, 3072, %s23, [#allocation3], 64, 64, 4
    $region9: #{residual_phi_forward.1} parent=1 // pred_fallthru
      _
    // Predicated region
    $region10: #{residual_phi_forward.1} parent=1 // pred_check
      _
    $region11: #{residual_phi_forward.1} parent=1 // pred_check_branch
      %30 = sbr.rel (0) target = $region13
    $region12: #{residual_phi_forward.1} parent=1 // pred_region
      _
    $region13: #{residual_phi_forward.1} parent=1 // pred_fallthru
      _
    // Predicated region
    $region14: #{residual_phi_forward.1} parent=1 // pred_check
      _
    $region15: #{residual_phi_forward.1} parent=1 // pred_check_branch
      %32 = sbr.rel (0) target = $region17
    $region16: #{residual_phi_forward.1} parent=1 // pred_region
      _
    $region17: #{residual_phi_forward.1} parent=1 // pred_fallthru
      _
    // Predicated region
    $region18: #{residual_phi_forward.1} parent=1 // pred_check
      _
    $region19: #{residual_phi_forward.1} parent=1 // pred_check_branch
      %34 = sbr.rel (0) target = $region21
    $region20: #{residual_phi_forward.1} parent=1 // pred_region
      %s36 = ssub.s32 3072, 3072
      %37 = vsyncadd [#allocation5], %s36
      %s38 = sshll.u32 [#allocation4], 4
      %s39 = int_to_ptr.vmem [resolvable:$true] %s38
      %44 = dma.hbm_to_vmem [thread:$0]  %s4, 3072, %s39, [#allocation5], 64, 64, 4
    $region21: #{residual_phi_forward.1} parent=1 // pred_fallthru
      _
    // Predicated region
    $region22: #{residual_phi_forward.1} parent=1 // pred_check
      _
    $region23: #{residual_phi_forward.1} parent=1 // pred_check_branch
      %46 = sbr.rel (0) target = $region25
    $region24: #{residual_phi_forward.1} parent=1 // pred_region
      _
    $region25: #{residual_phi_forward.1} parent=1 // pred_fallthru
      _
    // Predicated region
    $region26: #{residual_phi_forward.1} parent=1 // pred_check
      _
    $region27: #{residual_phi_forward.1} parent=1 // pred_check_branch
      %48 = sbr.rel (0) target = $region29
    $region28: #{residual_phi_forward.1} parent=1 // pred_region
      %49 = dma.done [#allocation3], 3072
    $region29: #{residual_phi_forward.1} parent=1 // pred_fallthru
      _
    // Predicated region
    $region30: #{residual_phi_forward.1} parent=1 // pred_check
      _
    $region31: #{residual_phi_forward.1} parent=1 // pred_check_branch
      %51 = sbr.rel (0) target = $region33
    $region32: #{residual_phi_forward.1} parent=1 // pred_region
      %52 = dma.done [#allocation5], 3072
    $region33: #{residual_phi_forward.1} parent=1 // pred_fallthru
      _
    %v54 = vld [vmem:[%s0] sm:$0xff]
    %v55 = vld [vmem:[%s0 + $0x8] sm:$0xff]
    %v56 = vpack.c.bf16 %v55, %v54
    %v57 = vld [vmem:[#allocation2] sm:$0xf]
    %v58 = vld [vmem:[#allocation2 + $0x4] sm:$0xf]
    %v59 = vld [vmem:[#allocation2 + $0x8] sm:$0xf]
    %v60 = vld [vmem:[#allocation2 + $0xc] sm:$0xf]
    %v61 = vld [vmem:[#allocation2 + $0x10] sm:$0xf]
    %v62 = vld [vmem:[#allocation2 + $0x14] sm:$0xf]
    %v63 = vld [vmem:[#allocation2 + $0x18] sm:$0xf]
    %v64 = vld [vmem:[#allocation2 + $0x1c] sm:$0xf]
    %v65 = vld [vmem:[#allocation2 + $0x20] sm:$0xf]
    %v66 = vld [vmem:[#allocation2 + $0x24] sm:$0xf]
    %v67 = vld [vmem:[#allocation2 + $0x28] sm:$0xf]
    %v68 = vld [vmem:[#allocation2 + $0x2c] sm:$0xf]
    %v69 = vld [vmem:[#allocation2 + $0x30] sm:$0xf]
    %v70 = vld [vmem:[#allocation2 + $0x34] sm:$0xf]
    %v71 = vld [vmem:[#allocation2 + $0x38] sm:$0xf]
    %v72 = vld [vmem:[#allocation2 + $0x3c] sm:$0xf]
    %v89 = vunpack.c.l.b16 %v57
    %v90 = vunpack.c.l.b16 %v58
    %v91 = vunpack.c.l.b16 %v59
    %v92 = vunpack.c.l.b16 %v60
    %v93 = vunpack.c.l.b16 %v61
    %v94 = vunpack.c.l.b16 %v62
    %v95 = vunpack.c.l.b16 %v63
    %v96 = vunpack.c.l.b16 %v64
    %v97 = vunpack.c.l.b16 %v65
    %v98 = vunpack.c.l.b16 %v66
    %v99 = vunpack.c.l.b16 %v67
    %v100 = vunpack.c.l.b16 %v68
    %v101 = vunpack.c.l.b16 %v69
    %v102 = vunpack.c.l.b16 %v70
    %v103 = vunpack.c.l.b16 %v71
    %v104 = vunpack.c.l.b16 %v72
    %v105 = vpack.c.b16 %v90, %v89
    %v106 = vpack.c.b16 %v92, %v91
    %v107 = vpack.c.b16 %v94, %v93
    %v108 = vpack.c.b16 %v96, %v95
    %v109 = vpack.c.b16 %v98, %v97
    %v110 = vpack.c.b16 %v100, %v99
    %v111 = vpack.c.b16 %v102, %v101
    %v112 = vpack.c.b16 %v104, %v103
    %121 = vmatprep.subr.bf16.mxu0 0
    %122 = vmatpush1.bf16.msra.mxu0 %v112
    %123 = vmatprep.subr.bf16.mxu0 0
    %124 = vmatpush1.bf16.msra.mxu0 %v111
    %125 = vmatprep.subr.bf16.mxu0 0
    %126 = vmatpush1.bf16.msra.mxu0 %v110
    %127 = vmatprep.subr.bf16.mxu0 0
    %128 = vmatpush1.bf16.msra.mxu0 %v109
    %129 = vmatprep.subr.bf16.mxu0 0
    %130 = vmatpush1.bf16.msra.mxu0 %v108
    %131 = vmatprep.subr.bf16.mxu0 0
    %132 = vmatpush1.bf16.msra.mxu0 %v107
    %133 = vmatprep.subr.bf16.mxu0 0
    %134 = vmatpush1.bf16.msra.mxu0 %v106
    %135 = vmatprep.subr.bf16.mxu0 0
    %136 = vmatpush1.bf16.msra.mxu0 %v105
    %137 = vmatprep.subr.bf16.mxu0 0
    %138 = vmatpush2.bf16.msra.mxu0 0
    %139 = vmatprep.subr.bf16.mxu0 0
    %140 = vmatpush2.bf16.msra.mxu0 0
    %141 = vmatprep.subr.bf16.mxu0 0
    %142 = vmatpush2.bf16.msra.mxu0 0
    %143 = vmatprep.subr.bf16.mxu0 0
    %144 = vmatpush2.bf16.msra.mxu0 0
    %145 = vmatprep.subr.bf16.mxu0 0
    %146 = vmatpush2.bf16.msra.mxu0 0
    %147 = vmatprep.subr.bf16.mxu0 0
    %148 = vmatpush2.bf16.msra.mxu0 0
    %149 = vmatprep.subr.bf16.mxu0 0
    %150 = vmatpush2.bf16.msra.mxu0 0
    %151 = vmatprep.subr.bf16.mxu0 0
    %152 = vmatpush2.bf16.msra.mxu0 0
    %153 = vmatprep.mubr.bf16.mxu0 0
    %154 = vmatmul.mubr.bf16.gmra.mxu0 %v56
    %v155 = vpop.f32.mrf.mxu0
    %v156 = vadd.f32 0.0, %v155
    %v157 = vpop.f32.mrf.mxu0
    %v158 = vpop.f32.mrf.mxu0
    %v159 = vadd.f32 0.0, %v158
    %v160 = vpop.f32.mrf.mxu0
    %161 = vdwg.mxu0
    %v162 = vrot.slane %v156, 4
    %v163 = vadd.f32 %v156, %v162
    %v164 = vrot.slane %v163, 2
    %v165 = vadd.f32 %v163, %v164
    %v166 = vrot.slane %v165, 1
    %v167 = vadd.f32 %v165, %v166
    %v168 = vrcp.pop 8.0
    %v169 = vmul.f32 %v167, %v168
    %v170 = vmul.f32 %v156, %v156
    %v171 = vrot.slane %v170, 4
    %v172 = vadd.f32 %v170, %v171
    %v173 = vrot.slane %v172, 2
    %v174 = vadd.f32 %v172, %v173
    %v175 = vrot.slane %v174, 1
    %v176 = vadd.f32 %v174, %v175
    %v177 = vmul.f32 %v176, %v168
    %v178 = vmul.f32 %v169, %v169
    %v179 = vsub.f32 %v177, %v178
    %v180 = vmax.f32 %v179, 0.0
    %v181 = vadd.f32 %v180, 1e-05
    %v182 = vrsqrt.pop %v181
    %v183 = vld [vmem:[%s2] sm:$0x1]
    %v184 = vmul.f32 %v182, %v183
    %v185 = vld [vmem:[%s3] sm:$0x1]
    %v186 = vmul.f32 %v169, %v184
    %v187 = vsub.f32 %v185, %v186
    %v188 = vlaneseq
    %v189 = vshrl.u32 %v188, 7
    %v190 = vsub.s32 0, %v189
    %v191 = vrot.slane %v184, %v190
    %v192 = vmul.f32 %v156, %v191
    %v193 = vmul.f32 %v159, %v191
    %v195 = vlaneseq
    %v196 = vshrl.u32 %v195, 7
    %v197 = vsub.s32 0, %v196
    %v198 = vrot.slane %v187, %v197
    %v200 = vadd.f32 %v192, %v198
    %v201 = vadd.f32 %v193, %v198
    %v202 = vmax.f32 %v200, 0.0
    %v203 = vmax.f32 %v201, 0.0
    %v204 = vpack.c.bf16 %v203, %v202
    %v205 = vld [vmem:[#allocation4] sm:$0xf]
    %v206 = vld [vmem:[#allocation4 + $0x4] sm:$0xf]
    %v207 = vld [vmem:[#allocation4 + $0x8] sm:$0xf]
    %v208 = vld [vmem:[#allocation4 + $0xc] sm:$0xf]
    %v209 = vld [vmem:[#allocation4 + $0x10] sm:$0xf]
    %v210 = vld [vmem:[#allocation4 + $0x14] sm:$0xf]
    %v211 = vld [vmem:[#allocation4 + $0x18] sm:$0xf]
    %v212 = vld [vmem:[#allocation4 + $0x1c] sm:$0xf]
    %v213 = vld [vmem:[#allocation4 + $0x20] sm:$0xf]
    %v214 = vld [vmem:[#allocation4 + $0x24] sm:$0xf]
    %v215 = vld [vmem:[#allocation4 + $0x28] sm:$0xf]
    %v216 = vld [vmem:[#allocation4 + $0x2c] sm:$0xf]
    %v217 = vld [vmem:[#allocation4 + $0x30] sm:$0xf]
    %v218 = vld [vmem:[#allocation4 + $0x34] sm:$0xf]
    %v219 = vld [vmem:[#allocation4 + $0x38] sm:$0xf]
    %v220 = vld [vmem:[#allocation4 + $0x3c] sm:$0xf]
    %v221 = vld [vmem:[%s5] sm:$0x1]
    %v223 = vlaneseq
    %v224 = vshrl.u32 %v223, 7
    %v225 = vsub.s32 0, %v224
    %v226 = vrot.slane %v221, %v225
    %v244 = vunpack.c.l.b16 %v205
    %v245 = vunpack.c.l.b16 %v206
    %v246 = vunpack.c.l.b16 %v207
    %v247 = vunpack.c.l.b16 %v208
    %v248 = vunpack.c.l.b16 %v209
    %v249 = vunpack.c.l.b16 %v210
    %v250 = vunpack.c.l.b16 %v211
    %v251 = vunpack.c.l.b16 %v212
    %v252 = vunpack.c.l.b16 %v213
    %v253 = vunpack.c.l.b16 %v214
    %v254 = vunpack.c.l.b16 %v215
    %v255 = vunpack.c.l.b16 %v216
    %v256 = vunpack.c.l.b16 %v217
    %v257 = vunpack.c.l.b16 %v218
    %v258 = vunpack.c.l.b16 %v219
    %v259 = vunpack.c.l.b16 %v220
    %v260 = vpack.c.b16 %v245, %v244
    %v261 = vpack.c.b16 %v247, %v246
    %v262 = vpack.c.b16 %v249, %v248
    %v263 = vpack.c.b16 %v251, %v250
    %v264 = vpack.c.b16 %v253, %v252
    %v265 = vpack.c.b16 %v255, %v254
    %v266 = vpack.c.b16 %v257, %v256
    %v267 = vpack.c.b16 %v259, %v258
    %276 = vmatprep.subr.bf16.mxu0 0
    %277 = vmatpush1.bf16.msra.mxu0 %v267
    %278 = vmatprep.subr.bf16.mxu0 0
    %279 = vmatpush1.bf16.msra.mxu0 %v266
    %280 = vmatprep.subr.bf16.mxu0 0
    %281 = vmatpush1.bf16.msra.mxu0 %v265
    %282 = vmatprep.subr.bf16.mxu0 0
    %283 = vmatpush1.bf16.msra.mxu0 %v264
    %284 = vmatprep.subr.bf16.mxu0 0
    %285 = vmatpush1.bf16.msra.mxu0 %v263
    %286 = vmatprep.subr.bf16.mxu0 0
    %287 = vmatpush1.bf16.msra.mxu0 %v262
    %288 = vmatprep.subr.bf16.mxu0 0
    %289 = vmatpush1.bf16.msra.mxu0 %v261
    %290 = vmatprep.subr.bf16.mxu0 0
    %291 = vmatpush1.bf16.msra.mxu0 %v260
    %292 = vmatprep.subr.bf16.mxu0 0
    %293 = vmatpush2.bf16.msra.mxu0 0
    %294 = vmatprep.subr.bf16.mxu0 0
    %295 = vmatpush2.bf16.msra.mxu0 0
    %296 = vmatprep.subr.bf16.mxu0 0
    %297 = vmatpush2.bf16.msra.mxu0 0
    %298 = vmatprep.subr.bf16.mxu0 0
    %299 = vmatpush2.bf16.msra.mxu0 0
    %300 = vmatprep.subr.bf16.mxu0 0
    %301 = vmatpush2.bf16.msra.mxu0 0
    %302 = vmatprep.subr.bf16.mxu0 0
    %303 = vmatpush2.bf16.msra.mxu0 0
    %304 = vmatprep.subr.bf16.mxu0 0
    %305 = vmatpush2.bf16.msra.mxu0 0
    %306 = vmatprep.subr.bf16.mxu0 0
    %307 = vmatpush2.bf16.msra.mxu0 0
    %308 = vmatprep.mubr.bf16.mxu0 0
    %309 = vmatmul.mubr.bf16.gmra.mxu0 %v204
    %v310 = vpop.f32.mrf.mxu0
    %v311 = vadd.f32 %v226, %v310
    %v312 = vpop.f32.mrf.mxu0
    %v313 = vpop.f32.mrf.mxu0
    %v314 = vadd.f32 %v226, %v313
    %v315 = vpop.f32.mrf.mxu0
    %316 = vdwg.mxu0
    %v317 = vadd.f32 %v54, %v311
    %v318 = vadd.f32 %v55, %v314
    %319 = vst [vmem:[%s7] sm:$0xff] %v311
    %320 = vst [vmem:[%s7 + $0x8] sm:$0xff] %v314
    %v321 = vpack.c.bf16 %v318, %v317
    %s322 = scalar_lea.vmem [#allocation2], 64
    %v323 = vld [vmem:[%s322] sm:$0xf]
    %v324 = vld [vmem:[%s322 + $0x4] sm:$0xf]
    %v325 = vld [vmem:[%s322 + $0x8] sm:$0xf]
    %v326 = vld [vmem:[%s322 + $0xc] sm:$0xf]
    %v327 = vld [vmem:[%s322 + $0x10] sm:$0xf]
    %v328 = vld [vmem:[%s322 + $0x14] sm:$0xf]
    %v329 = vld [vmem:[%s322 + $0x18] sm:$0xf]
    %v330 = vld [vmem:[%s322 + $0x1c] sm:$0xf]
    %v331 = vld [vmem:[%s322 + $0x20] sm:$0xf]
    %v332 = vld [vmem:[%s322 + $0x24] sm:$0xf]
    %v333 = vld [vmem:[%s322 + $0x28] sm:$0xf]
    %v334 = vld [vmem:[%s322 + $0x2c] sm:$0xf]
    %v335 = vld [vmem:[%s322 + $0x30] sm:$0xf]
    %v336 = vld [vmem:[%s322 + $0x34] sm:$0xf]
    %v337 = vld [vmem:[%s322 + $0x38] sm:$0xf]
    %v338 = vld [vmem:[%s322 + $0x3c] sm:$0xf]
    %v355 = vunpack.c.l.b16 %v323
    %v356 = vunpack.c.l.b16 %v324
    %v357 = vunpack.c.l.b16 %v325
    %v358 = vunpack.c.l.b16 %v326
    %v359 = vunpack.c.l.b16 %v327
    %v360 = vunpack.c.l.b16 %v328
    %v361 = vunpack.c.l.b16 %v329
    %v362 = vunpack.c.l.b16 %v330
    %v363 = vunpack.c.l.b16 %v331
    %v364 = vunpack.c.l.b16 %v332
    %v365 = vunpack.c.l.b16 %v333
    %v366 = vunpack.c.l.b16 %v334
    %v367 = vunpack.c.l.b16 %v335
    %v368 = vunpack.c.l.b16 %v336
    %v369 = vunpack.c.l.b16 %v337
    %v370 = vunpack.c.l.b16 %v338
    %v371 = vpack.c.b16 %v356, %v355
    %v372 = vpack.c.b16 %v358, %v357
    %v373 = vpack.c.b16 %v360, %v359
    %v374 = vpack.c.b16 %v362, %v361
    %v375 = vpack.c.b16 %v364, %v363
    %v376 = vpack.c.b16 %v366, %v365
    %v377 = vpack.c.b16 %v368, %v367
    %v378 = vpack.c.b16 %v370, %v369
    %387 = vmatprep.subr.bf16.mxu0 0
    %388 = vmatpush1.bf16.msra.mxu0 %v378
    %389 = vmatprep.subr.bf16.mxu0 0
    %390 = vmatpush1.bf16.msra.mxu0 %v377
    %391 = vmatprep.subr.bf16.mxu0 0
    %392 = vmatpush1.bf16.msra.mxu0 %v376
    %393 = vmatprep.subr.bf16.mxu0 0
    %394 = vmatpush1.bf16.msra.mxu0 %v375
    %395 = vmatprep.subr.bf16.mxu0 0
    %396 = vmatpush1.bf16.msra.mxu0 %v374
    %397 = vmatprep.subr.bf16.mxu0 0
    %398 = vmatpush1.bf16.msra.mxu0 %v373
    %399 = vmatprep.subr.bf16.mxu0 0
    %400 = vmatpush1.bf16.msra.mxu0 %v372
    %401 = vmatprep.subr.bf16.mxu0 0
    %402 = vmatpush1.bf16.msra.mxu0 %v371
    %403 = vmatprep.subr.bf16.mxu0 0
    %404 = vmatpush2.bf16.msra.mxu0 0
    %405 = vmatprep.subr.bf16.mxu0 0
    %406 = vmatpush2.bf16.msra.mxu0 0
    %407 = vmatprep.subr.bf16.mxu0 0
    %408 = vmatpush2.bf16.msra.mxu0 0
    %409 = vmatprep.subr.bf16.mxu0 0
    %410 = vmatpush2.bf16.msra.mxu0 0
    %411 = vmatprep.subr.bf16.mxu0 0
    %412 = vmatpush2.bf16.msra.mxu0 0
    %413 = vmatprep.subr.bf16.mxu0 0
    %414 = vmatpush2.bf16.msra.mxu0 0
    %415 = vmatprep.subr.bf16.mxu0 0
    %416 = vmatpush2.bf16.msra.mxu0 0
    %417 = vmatprep.subr.bf16.mxu0 0
    %418 = vmatpush2.bf16.msra.mxu0 0
    %419 = vmatprep.mubr.bf16.mxu0 0
    %420 = vmatmul.mubr.bf16.gmra.mxu0 %v321
    %v421 = vpop.f32.mrf.mxu0
    %v422 = vadd.f32 0.0, %v421
    %v423 = vpop.f32.mrf.mxu0
    %v424 = vpop.f32.mrf.mxu0
    %v425 = vadd.f32 0.0, %v424
    %v426 = vpop.f32.mrf.mxu0
    %427 = vdwg.mxu0
    %v428 = vrot.slane %v422, 4
    %v429 = vadd.f32 %v422, %v428
    %v430 = vrot.slane %v429, 2
    %v431 = vadd.f32 %v429, %v430
    %v432 = vrot.slane %v431, 1
    %v433 = vadd.f32 %v431, %v432
    %v434 = vmul.f32 %v433, %v168
    %v435 = vmul.f32 %v422, %v422
    %v436 = vrot.slane %v435, 4
    %v437 = vadd.f32 %v435, %v436
    %v438 = vrot.slane %v437, 2
    %v439 = vadd.f32 %v437, %v438
    %v440 = vrot.slane %v439, 1
    %v441 = vadd.f32 %v439, %v440
    %v442 = vmul.f32 %v441, %v168
    %v443 = vmul.f32 %v434, %v434
    %v444 = vsub.f32 %v442, %v443
    %v445 = vmax.f32 %v444, 0.0
    %v446 = vadd.f32 %v445, 1e-05
    %v447 = vrsqrt.pop %v446
    %s448 = scalar_lea.vmem %s2, 1
    %v449 = vld [vmem:[%s448] sm:$0x1]
    %v450 = vmul.f32 %v447, %v449
    %s451 = scalar_lea.vmem %s3, 1
    %v452 = vld [vmem:[%s451] sm:$0x1]
    %v453 = vmul.f32 %v434, %v450
    %v454 = vsub.f32 %v452, %v453
    %v455 = vlaneseq
    %v456 = vshrl.u32 %v455, 7
    %v457 = vsub.s32 0, %v456
    %v458 = vrot.slane %v450, %v457
    %v459 = vmul.f32 %v422, %v458
    %v460 = vmul.f32 %v425, %v458
    %v462 = vlaneseq
    %v463 = vshrl.u32 %v462, 7
    %v464 = vsub.s32 0, %v463
    %v465 = vrot.slane %v454, %v464
    %v467 = vadd.f32 %v459, %v465
    %v468 = vadd.f32 %v460, %v465
    %v469 = vmax.f32 %v467, 0.0
    %v470 = vmax.f32 %v468, 0.0
    %v471 = vpack.c.bf16 %v470, %v469
    %s472 = scalar_lea.vmem [#allocation4], 64
    %v473 = vld [vmem:[%s472] sm:$0xf]
    %v474 = vld [vmem:[%s472 + $0x4] sm:$0xf]
    %v475 = vld [vmem:[%s472 + $0x8] sm:$0xf]
    %v476 = vld [vmem:[%s472 + $0xc] sm:$0xf]
    %v477 = vld [vmem:[%s472 + $0x10] sm:$0xf]
    %v478 = vld [vmem:[%s472 + $0x14] sm:$0xf]
    %v479 = vld [vmem:[%s472 + $0x18] sm:$0xf]
    %v480 = vld [vmem:[%s472 + $0x1c] sm:$0xf]
    %v481 = vld [vmem:[%s472 + $0x20] sm:$0xf]
    %v482 = vld [vmem:[%s472 + $0x24] sm:$0xf]
    %v483 = vld [vmem:[%s472 + $0x28] sm:$0xf]
    %v484 = vld [vmem:[%s472 + $0x2c] sm:$0xf]
    %v485 = vld [vmem:[%s472 + $0x30] sm:$0xf]
    %v486 = vld [vmem:[%s472 + $0x34] sm:$0xf]
    %v487 = vld [vmem:[%s472 + $0x38] sm:$0xf]
    %v488 = vld [vmem:[%s472 + $0x3c] sm:$0xf]
    %s489 = scalar_lea.vmem %s5, 1
    %v490 = vld [vmem:[%s489] sm:$0x1]
    %v492 = vlaneseq
    %v493 = vshrl.u32 %v492, 7
    %v494 = vsub.s32 0, %v493
    %v495 = vrot.slane %v490, %v494
    %v513 = vunpack.c.l.b16 %v473
    %v514 = vunpack.c.l.b16 %v474
    %v515 = vunpack.c.l.b16 %v475
    %v516 = vunpack.c.l.b16 %v476
    %v517 = vunpack.c.l.b16 %v477
    %v518 = vunpack.c.l.b16 %v478
    %v519 = vunpack.c.l.b16 %v479
    %v520 = vunpack.c.l.b16 %v480
    %v521 = vunpack.c.l.b16 %v481
    %v522 = vunpack.c.l.b16 %v482
    %v523 = vunpack.c.l.b16 %v483
    %v524 = vunpack.c.l.b16 %v484
    %v525 = vunpack.c.l.b16 %v485
    %v526 = vunpack.c.l.b16 %v486
    %v527 = vunpack.c.l.b16 %v487
    %v528 = vunpack.c.l.b16 %v488
    %v529 = vpack.c.b16 %v514, %v513
    %v530 = vpack.c.b16 %v516, %v515
    %v531 = vpack.c.b16 %v518, %v517
    %v532 = vpack.c.b16 %v520, %v519
    %v533 = vpack.c.b16 %v522, %v521
    %v534 = vpack.c.b16 %v524, %v523
    %v535 = vpack.c.b16 %v526, %v525
    %v536 = vpack.c.b16 %v528, %v527
    %545 = vmatprep.subr.bf16.mxu0 0
    %546 = vmatpush1.bf16.msra.mxu0 %v536
    %547 = vmatprep.subr.bf16.mxu0 0
    %548 = vmatpush1.bf16.msra.mxu0 %v535
    %549 = vmatprep.subr.bf16.mxu0 0
    %550 = vmatpush1.bf16.msra.mxu0 %v534
    %551 = vmatprep.subr.bf16.mxu0 0
    %552 = vmatpush1.bf16.msra.mxu0 %v533
    %553 = vmatprep.subr.bf16.mxu0 0
    %554 = vmatpush1.bf16.msra.mxu0 %v532
    %555 = vmatprep.subr.bf16.mxu0 0
    %556 = vmatpush1.bf16.msra.mxu0 %v531
    %557 = vmatprep.subr.bf16.mxu0 0
    %558 = vmatpush1.bf16.msra.mxu0 %v530
    %559 = vmatprep.subr.bf16.mxu0 0
    %560 = vmatpush1.bf16.msra.mxu0 %v529
    %561 = vmatprep.subr.bf16.mxu0 0
    %562 = vmatpush2.bf16.msra.mxu0 0
    %563 = vmatprep.subr.bf16.mxu0 0
    %564 = vmatpush2.bf16.msra.mxu0 0
    %565 = vmatprep.subr.bf16.mxu0 0
    %566 = vmatpush2.bf16.msra.mxu0 0
    %567 = vmatprep.subr.bf16.mxu0 0
    %568 = vmatpush2.bf16.msra.mxu0 0
    %569 = vmatprep.subr.bf16.mxu0 0
    %570 = vmatpush2.bf16.msra.mxu0 0
    %571 = vmatprep.subr.bf16.mxu0 0
    %572 = vmatpush2.bf16.msra.mxu0 0
    %573 = vmatprep.subr.bf16.mxu0 0
    %574 = vmatpush2.bf16.msra.mxu0 0
    %575 = vmatprep.subr.bf16.mxu0 0
    %576 = vmatpush2.bf16.msra.mxu0 0
    %577 = vmatprep.mubr.bf16.mxu0 0
    %578 = vmatmul.mubr.bf16.gmra.mxu0 %v471
    %v579 = vpop.f32.mrf.mxu0
    %v580 = vadd.f32 %v495, %v579
    %v581 = vpop.f32.mrf.mxu0
    %v582 = vpop.f32.mrf.mxu0
    %v583 = vadd.f32 %v495, %v582
    %v584 = vpop.f32.mrf.mxu0
    %585 = vdwg.mxu0
    %v586 = vadd.f32 %v317, %v580
    %v587 = vadd.f32 %v318, %v583
    %s588 = scalar_lea.vmem %s7, 16
    %589 = vst [vmem:[%s588] sm:$0xff] %v580
    %590 = vst [vmem:[%s588 + $0x8] sm:$0xff] %v583
    %v591 = vpack.c.bf16 %v587, %v586
    %s592 = scalar_lea.vmem [#allocation2], 128
    %v593 = vld [vmem:[%s592] sm:$0xf]
    %v594 = vld [vmem:[%s592 + $0x4] sm:$0xf]
    %v595 = vld [vmem:[%s592 + $0x8] sm:$0xf]
    %v596 = vld [vmem:[%s592 + $0xc] sm:$0xf]
    %v597 = vld [vmem:[%s592 + $0x10] sm:$0xf]
    %v598 = vld [vmem:[%s592 + $0x14] sm:$0xf]
    %v599 = vld [vmem:[%s592 + $0x18] sm:$0xf]
    %v600 = vld [vmem:[%s592 + $0x1c] sm:$0xf]
    %v601 = vld [vmem:[%s592 + $0x20] sm:$0xf]
    %v602 = vld [vmem:[%s592 + $0x24] sm:$0xf]
    %v603 = vld [vmem:[%s592 + $0x28] sm:$0xf]
    %v604 = vld [vmem:[%s592 + $0x2c] sm:$0xf]
    %v605 = vld [vmem:[%s592 + $0x30] sm:$0xf]
    %v606 = vld [vmem:[%s592 + $0x34] sm:$0xf]
    %v607 = vld [vmem:[%s592 + $0x38] sm:$0xf]
    %v608 = vld [vmem:[%s592 + $0x3c] sm:$0xf]
    %v625 = vunpack.c.l.b16 %v593
    %v626 = vunpack.c.l.b16 %v594
    %v627 = vunpack.c.l.b16 %v595
    %v628 = vunpack.c.l.b16 %v596
    %v629 = vunpack.c.l.b16 %v597
    %v630 = vunpack.c.l.b16 %v598
    %v631 = vunpack.c.l.b16 %v599
    %v632 = vunpack.c.l.b16 %v600
    %v633 = vunpack.c.l.b16 %v601
    %v634 = vunpack.c.l.b16 %v602
    %v635 = vunpack.c.l.b16 %v603
    %v636 = vunpack.c.l.b16 %v604
    %v637 = vunpack.c.l.b16 %v605
    %v638 = vunpack.c.l.b16 %v606
    %v639 = vunpack.c.l.b16 %v607
    %v640 = vunpack.c.l.b16 %v608
    %v641 = vpack.c.b16 %v626, %v625
    %v642 = vpack.c.b16 %v628, %v627
    %v643 = vpack.c.b16 %v630, %v629
    %v644 = vpack.c.b16 %v632, %v631
    %v645 = vpack.c.b16 %v634, %v633
    %v646 = vpack.c.b16 %v636, %v635
    %v647 = vpack.c.b16 %v638, %v637
    %v648 = vpack.c.b16 %v640, %v639
    %657 = vmatprep.subr.bf16.mxu0 0
    %658 = vmatpush1.bf16.msra.mxu0 %v648
    %659 = vmatprep.subr.bf16.mxu0 0
    %660 = vmatpush1.bf16.msra.mxu0 %v647
    %661 = vmatprep.subr.bf16.mxu0 0
    %662 = vmatpush1.bf16.msra.mxu0 %v646
    %663 = vmatprep.subr.bf16.mxu0 0
    %664 = vmatpush1.bf16.msra.mxu0 %v645
    %665 = vmatprep.subr.bf16.mxu0 0
    %666 = vmatpush1.bf16.msra.mxu0 %v644
    %667 = vmatprep.subr.bf16.mxu0 0
    %668 = vmatpush1.bf16.msra.mxu0 %v643
    %669 = vmatprep.subr.bf16.mxu0 0
    %670 = vmatpush1.bf16.msra.mxu0 %v642
    %671 = vmatprep.subr.bf16.mxu0 0
    %672 = vmatpush1.bf16.msra.mxu0 %v641
    %673 = vmatprep.subr.bf16.mxu0 0
    %674 = vmatpush2.bf16.msra.mxu0 0
    %675 = vmatprep.subr.bf16.mxu0 0
    %676 = vmatpush2.bf16.msra.mxu0 0
    %677 = vmatprep.subr.bf16.mxu0 0
    %678 = vmatpush2.bf16.msra.mxu0 0
    %679 = vmatprep.subr.bf16.mxu0 0
    %680 = vmatpush2.bf16.msra.mxu0 0
    %681 = vmatprep.subr.bf16.mxu0 0
    %682 = vmatpush2.bf16.msra.mxu0 0
    %683 = vmatprep.subr.bf16.mxu0 0
    %684 = vmatpush2.bf16.msra.mxu0 0
    %685 = vmatprep.subr.bf16.mxu0 0
    %686 = vmatpush2.bf16.msra.mxu0 0
    %687 = vmatprep.subr.bf16.mxu0 0
    %688 = vmatpush2.bf16.msra.mxu0 0
    %689 = vmatprep.mubr.bf16.mxu0 0
    %690 = vmatmul.mubr.bf16.gmra.mxu0 %v591
    %v691 = vpop.f32.mrf.mxu0
    %v692 = vadd.f32 0.0, %v691
    %v693 = vpop.f32.mrf.mxu0
    %v694 = vpop.f32.mrf.mxu0
    %v695 = vadd.f32 0.0, %v694
    %v696 = vpop.f32.mrf.mxu0
    %697 = vdwg.mxu0
    %v698 = vrot.slane %v692, 4
    %v699 = vadd.f32 %v692, %v698
    %v700 = vrot.slane %v699, 2
    %v701 = vadd.f32 %v699, %v700
    %v702 = vrot.slane %v701, 1
    %v703 = vadd.f32 %v701, %v702
    %v704 = vmul.f32 %v703, %v168
    %v705 = vmul.f32 %v692, %v692
    %v706 = vrot.slane %v705, 4
    %v707 = vadd.f32 %v705, %v706
    %v708 = vrot.slane %v707, 2
    %v709 = vadd.f32 %v707, %v708
    %v710 = vrot.slane %v709, 1
    %v711 = vadd.f32 %v709, %v710
    %v712 = vmul.f32 %v711, %v168
    %v713 = vmul.f32 %v704, %v704
    %v714 = vsub.f32 %v712, %v713
    %v715 = vmax.f32 %v714, 0.0
    %v716 = vadd.f32 %v715, 1e-05
    %v717 = vrsqrt.pop %v716
    %s718 = scalar_lea.vmem %s2, 2
    %v719 = vld [vmem:[%s718] sm:$0x1]
    %v720 = vmul.f32 %v717, %v719
    %s721 = scalar_lea.vmem %s3, 2
    %v722 = vld [vmem:[%s721] sm:$0x1]
    %v723 = vmul.f32 %v704, %v720
    %v724 = vsub.f32 %v722, %v723
    %v725 = vlaneseq
    %v726 = vshrl.u32 %v725, 7
    %v727 = vsub.s32 0, %v726
    %v728 = vrot.slane %v720, %v727
    %v729 = vmul.f32 %v692, %v728
    %v730 = vmul.f32 %v695, %v728
    %v732 = vlaneseq
    %v733 = vshrl.u32 %v732, 7
    %v734 = vsub.s32 0, %v733
    %v735 = vrot.slane %v724, %v734
    %v737 = vadd.f32 %v729, %v735
    %v738 = vadd.f32 %v730, %v735
    %v739 = vmax.f32 %v737, 0.0
    %v740 = vmax.f32 %v738, 0.0
    %v741 = vpack.c.bf16 %v740, %v739
    %s742 = scalar_lea.vmem [#allocation4], 128
    %v743 = vld [vmem:[%s742] sm:$0xf]
    %v744 = vld [vmem:[%s742 + $0x4] sm:$0xf]
    %v745 = vld [vmem:[%s742 + $0x8] sm:$0xf]
    %v746 = vld [vmem:[%s742 + $0xc] sm:$0xf]
    %v747 = vld [vmem:[%s742 + $0x10] sm:$0xf]
    %v748 = vld [vmem:[%s742 + $0x14] sm:$0xf]
    %v749 = vld [vmem:[%s742 + $0x18] sm:$0xf]
    %v750 = vld [vmem:[%s742 + $0x1c] sm:$0xf]
    %v751 = vld [vmem:[%s742 + $0x20] sm:$0xf]
    %v752 = vld [vmem:[%s742 + $0x24] sm:$0xf]
    %v753 = vld [vmem:[%s742 + $0x28] sm:$0xf]
    %v754 = vld [vmem:[%s742 + $0x2c] sm:$0xf]
    %v755 = vld [vmem:[%s742 + $0x30] sm:$0xf]
    %v756 = vld [vmem:[%s742 + $0x34] sm:$0xf]
    %v757 = vld [vmem:[%s742 + $0x38] sm:$0xf]
    %v758 = vld [vmem:[%s742 + $0x3c] sm:$0xf]
    %s759 = scalar_lea.vmem %s5, 2
    %v760 = vld [vmem:[%s759] sm:$0x1]
    %v762 = vlaneseq
    %v763 = vshrl.u32 %v762, 7
    %v764 = vsub.s32 0, %v763
    %v765 = vrot.slane %v760, %v764
    %v783 = vunpack.c.l.b16 %v743
    %v784 = vunpack.c.l.b16 %v744
    %v785 = vunpack.c.l.b16 %v745
    %v786 = vunpack.c.l.b16 %v746
    %v787 = vunpack.c.l.b16 %v747
    %v788 = vunpack.c.l.b16 %v748
    %v789 = vunpack.c.l.b16 %v749
    %v790 = vunpack.c.l.b16 %v750
    %v791 = vunpack.c.l.b16 %v751
    %v792 = vunpack.c.l.b16 %v752
    %v793 = vunpack.c.l.b16 %v753
    %v794 = vunpack.c.l.b16 %v754
    %v795 = vunpack.c.l.b16 %v755
    %v796 = vunpack.c.l.b16 %v756
    %v797 = vunpack.c.l.b16 %v757
    %v798 = vunpack.c.l.b16 %v758
    %v799 = vpack.c.b16 %v784, %v783
    %v800 = vpack.c.b16 %v786, %v785
    %v801 = vpack.c.b16 %v788, %v787
    %v802 = vpack.c.b16 %v790, %v789
    %v803 = vpack.c.b16 %v792, %v791
    %v804 = vpack.c.b16 %v794, %v793
    %v805 = vpack.c.b16 %v796, %v795
    %v806 = vpack.c.b16 %v798, %v797
    %815 = vmatprep.subr.bf16.mxu0 0
    %816 = vmatpush1.bf16.msra.mxu0 %v806
    %817 = vmatprep.subr.bf16.mxu0 0
    %818 = vmatpush1.bf16.msra.mxu0 %v805
    %819 = vmatprep.subr.bf16.mxu0 0
    %820 = vmatpush1.bf16.msra.mxu0 %v804
    %821 = vmatprep.subr.bf16.mxu0 0
    %822 = vmatpush1.bf16.msra.mxu0 %v803
    %823 = vmatprep.subr.bf16.mxu0 0
    %824 = vmatpush1.bf16.msra.mxu0 %v802
    %825 = vmatprep.subr.bf16.mxu0 0
    %826 = vmatpush1.bf16.msra.mxu0 %v801
    %827 = vmatprep.subr.bf16.mxu0 0
    %828 = vmatpush1.bf16.msra.mxu0 %v800
    %829 = vmatprep.subr.bf16.mxu0 0
    %830 = vmatpush1.bf16.msra.mxu0 %v799
    %831 = vmatprep.subr.bf16.mxu0 0
    %832 = vmatpush2.bf16.msra.mxu0 0
    %833 = vmatprep.subr.bf16.mxu0 0
    %834 = vmatpush2.bf16.msra.mxu0 0
    %835 = vmatprep.subr.bf16.mxu0 0
    %836 = vmatpush2.bf16.msra.mxu0 0
    %837 = vmatprep.subr.bf16.mxu0 0
    %838 = vmatpush2.bf16.msra.mxu0 0
    %839 = vmatprep.subr.bf16.mxu0 0
    %840 = vmatpush2.bf16.msra.mxu0 0
    %841 = vmatprep.subr.bf16.mxu0 0
    %842 = vmatpush2.bf16.msra.mxu0 0
    %843 = vmatprep.subr.bf16.mxu0 0
    %844 = vmatpush2.bf16.msra.mxu0 0
    %845 = vmatprep.subr.bf16.mxu0 0
    %846 = vmatpush2.bf16.msra.mxu0 0
    %847 = vmatprep.mubr.bf16.mxu0 0
    %848 = vmatmul.mubr.bf16.gmra.mxu0 %v741
    %v849 = vpop.f32.mrf.mxu0
    %v850 = vadd.f32 %v765, %v849
    %v851 = vpop.f32.mrf.mxu0
    %v852 = vpop.f32.mrf.mxu0
    %v853 = vadd.f32 %v765, %v852
    %v854 = vpop.f32.mrf.mxu0
    %855 = vdwg.mxu0
    %v856 = vadd.f32 %v586, %v850
    %v857 = vadd.f32 %v587, %v853
    %s858 = scalar_lea.vmem %s7, 32
    %859 = vst [vmem:[%s858] sm:$0xff] %v850
    %860 = vst [vmem:[%s858 + $0x8] sm:$0xff] %v853
    %861 = vst [vmem:[%s6] sm:$0xff] %v856
    %862 = vst [vmem:[%s6 + $0x8] sm:$0xff] %v857
    // Predicated region
    $region34: #{residual_phi_forward.1} parent=1 // pred_check
      _
    $region35: #{residual_phi_forward.1} parent=1 // pred_check_branch
      %864 = sbr.rel (0) target = $region37
    $region36: #{residual_phi_forward.1} parent=1 // pred_region
      _
    $region37: #{residual_phi_forward.1} parent=1 // pred_fallthru
      _
    // Predicated region
    $region38: #{residual_phi_forward.1} parent=1 // pred_check
      _
    $region39: #{residual_phi_forward.1} parent=1 // pred_check_branch
      %866 = sbr.rel (0) target = $region41
    $region40: #{residual_phi_forward.1} parent=1 // pred_region
      _
    $region41: #{residual_phi_forward.1} parent=1 // pred_fallthru
      _
    // Predicated region
    $region42: #{residual_phi_forward.1} parent=1 // pred_check
      _
    $region43: #{residual_phi_forward.1} parent=1 // pred_check_branch
      %868 = sbr.rel (0) target = $region45
    $region44: #{residual_phi_forward.1} parent=1 // pred_region
      _
    $region45: #{residual_phi_forward.1} parent=1 // pred_fallthru
      _
    // Predicated region
    $region46: #{residual_phi_forward.1} parent=1 // pred_check
      _
    $region47: #{residual_phi_forward.1} parent=1 // pred_check_branch
      %870 = sbr.rel (0) target = $region49
    $region48: #{residual_phi_forward.1} parent=1 // pred_region
      _
    $region49: #{residual_phi_forward.1} parent=1 // pred_fallthru
      _
    %871 = vsyncpa [#allocation3], 1
    %872 = vsyncpa [#allocation5], 1

</llo_original>
